<compile_context>
chip_gen: v5e
topology: v5e:2x2
jax: 0.10.0
libtpu: 0.0.40
codegen_flags: <defaults>
</compile_context>

<pallas_src>
import functools

import jax
import jax.numpy as jnp
from jax.experimental import pallas as pl
from jax.experimental.pallas import tpu as pltpu


_NEG_BIG = -9.0e15  # mask constant from the PyTorch module


def _h_kernel(x_ref, wt_ref, att_ref, h_ref, la_ref, *, alpha):
    # h = X @ W^T on the MXU: bf16 operands, f32 accumulation.
    h = jnp.dot(x_ref[...], wt_ref[...], preferred_element_type=jnp.float32)
    # a = h @ att_weights  (lane reduction; att passed as a (1, out_pad) row;
    # padded att columns are zero so they do not perturb the score).
    a = jnp.sum(h * att_ref[...], axis=-1, keepdims=True)
    # Hoisted leaky_relu: every unmasked score in row i equals a_i, and the
    # masked branch only needs to underflow in exp -> identical numerics.
    la_ref[...] = jnp.where(a > 0, a, alpha * a)
    h_ref[...] = h.astype(h_ref.dtype)


def _attn_kernel(a_ref, la_ref, h_ref, out_ref, m_sc, l_sc, acc_sc):
    j = pl.program_id(1)

    @pl.when(j == 0)
    def _():
        m_sc[...] = jnp.full_like(m_sc[...], -jnp.inf)
        l_sc[...] = jnp.zeros_like(l_sc[...])
        acc_sc[...] = jnp.zeros_like(acc_sc[...])

    adj = a_ref[...]                                  # (bm, bn) bf16 adjacency
    la = jnp.broadcast_to(la_ref[...], adj.shape)     # (bm, bn) f32
    s = jnp.where(adj > 0, la, _NEG_BIG)              # masked leaky scores

    m_prev = m_sc[...]
    m_new = jnp.maximum(m_prev, jnp.max(s, axis=-1, keepdims=True))
    corr = jnp.exp(m_prev - m_new)
    p = jnp.exp(s - m_new)                            # (bm, bn) numerators

    l_sc[...] = corr * l_sc[...] + jnp.sum(p, axis=-1, keepdims=True)
    acc_sc[...] = corr * acc_sc[...] + jnp.dot(
        p.astype(h_ref.dtype), h_ref[...], preferred_element_type=jnp.float32)
    m_sc[...] = m_new

    @pl.when(j == pl.num_programs(1) - 1)
    def _():
        inv_l = pl.reciprocal(l_sc[...], approx=True)   # EUP vrcp, ~free
        out_ref[...] = (acc_sc[...] * inv_l).astype(out_ref.dtype)


def _round_up(x, m):
    return (x + m - 1) // m * m


def _pad2d(x, rows, cols):
    r, c = x.shape
    if r == rows and c == cols:
        return x
    return jnp.pad(x, ((0, rows - r), (0, cols - c)))


def gat_layer_forward(X, W, att_weights, A, alpha, *, block=256,
                      vmem_limit_bytes=32 * 1024 * 1024):
    """X: (N, in_dim), W: (out_dim, in_dim) [nn.Linear layout],
    att_weights: (out_dim, 1), A: (N, N).  Returns (N, out_dim) f32."""
    N, in_dim = X.shape
    out_dim = W.shape[0]

    # Lane-dense feature axis (multiple of 128) and evenly-tiled node axis.
    out_p = _round_up(out_dim, 128)
    blk = min(block, _round_up(N, 128))
    n_p = _round_up(N, blk)

    x_p = _pad2d(X, n_p, in_dim).astype(jnp.bfloat16)
    wt_p = _pad2d(W.T, in_dim, out_p).astype(jnp.bfloat16)
    att_p = _pad2d(att_weights.reshape(1, out_dim), 1, out_p).astype(jnp.float32)
    # Kernel only tests A > 0, so a bf16 adjacency halves HBM traffic / VMEM.
    a_p = _pad2d(A, n_p, n_p).astype(jnp.bfloat16)
    # NOTE: a row of A with no nonzero entry softmaxes uniformly over all
    # (padded) columns; that matches the reference only when N == n_p.  Real
    # GAT graphs (and the demo below) always carry self-loops.

    n_row = n_p // blk
    n_col = n_p // blk

    # Pass 1: h = X @ W^T staged to HBM in bf16, plus the leaky per-node score.
    h_bf16, la = pl.pallas_call(
        functools.partial(_h_kernel, alpha=float(alpha)),
        out_shape=(jax.ShapeDtypeStruct((n_p, out_p), jnp.bfloat16),
                   jax.ShapeDtypeStruct((n_p, 1), jnp.float32)),
        grid_spec=pltpu.PrefetchScalarGridSpec(
            num_scalar_prefetch=0,
            grid=(n_row,),
            in_specs=[pl.BlockSpec((blk, in_dim), lambda i: (i, 0)),
                      pl.BlockSpec((in_dim, out_p), lambda i: (0, 0)),
                      pl.BlockSpec((1, out_p), lambda i: (0, 0))],
            out_specs=[pl.BlockSpec((blk, out_p), lambda i: (i, 0)),
                       pl.BlockSpec((blk, 1), lambda i: (i, 0))]),
        compiler_params=pltpu.CompilerParams(
            dimension_semantics=("parallel",),
            vmem_limit_bytes=vmem_limit_bytes),
    )(x_p, wt_p, att_p)

    # Pass 2: tiled masked softmax + aggregation.  Row tiles are independent
    # ("parallel"); column tiles are an online-softmax reduction ("arbitrary").
    out = pl.pallas_call(
        _attn_kernel,
        out_shape=jax.ShapeDtypeStruct((n_p, out_p), jnp.float32),
        grid_spec=pltpu.PrefetchScalarGridSpec(
            num_scalar_prefetch=0,
            grid=(n_row, n_col),
            in_specs=[pl.BlockSpec((blk, blk), lambda i, j: (i, j)),     # A
                      pl.BlockSpec((blk, 1), lambda i, j: (i, 0)),       # la
                      pl.BlockSpec((blk, out_p), lambda i, j: (j, 0))],  # h
            out_specs=pl.BlockSpec((blk, out_p), lambda i, j: (i, 0)),
            scratch_shapes=[pltpu.VMEM((blk, 1), jnp.float32),      # m
                            pltpu.VMEM((blk, 1), jnp.float32),      # l
                            pltpu.VMEM((blk, out_p), jnp.float32)]),  # acc
        compiler_params=pltpu.CompilerParams(
            dimension_semantics=("parallel", "arbitrary"),
            vmem_limit_bytes=vmem_limit_bytes),
    )(a_p, la, h_bf16)

    return out[:N, :out_dim]


def _reference(X, W, att_weights, A, alpha):
    h = X @ W.T
    a = h @ att_weights
    scores = jnp.where(A > 0, a, jnp.full_like(A, _NEG_BIG))
    scores = jnp.where(scores > 0, scores, alpha * scores)
    attention = jax.nn.softmax(scores, axis=1)
    return attention @ h


if __name__ == "__main__":
    key = jax.random.PRNGKey(0)
    k_x, k_w, k_att, k_a = jax.random.split(key, 4)

    # Small but grid-exercising shapes: 512 nodes with 256-wide tiles -> 2x2
    # grid; out_dim=128 keeps the output lane-dense without padding.
    N, in_dim, out_dim = 512, 64, 128
    dropout = 0.1      # eval-mode identity (unused)
    alpha = 0.2        # leaky-relu negative slope

    X = jax.random.normal(k_x, (N, in_dim), dtype=jnp.float32)

    # Deterministic parameter init (shapes match the PyTorch module).
    bound_w = 1.0 / (in_dim ** 0.5)
    W = jax.random.uniform(
        k_w, (out_dim, in_dim), minval=-bound_w, maxval=bound_w,
        dtype=jnp.float32)
    gain = 1.414
    bound_a = gain * (6.0 / (out_dim + 1)) ** 0.5
    att_weights = jax.random.uniform(
        k_att, (out_dim, 1), minval=-bound_a, maxval=bound_a,
        dtype=jnp.float32)

    # Random sparse-ish adjacency with self-loops (every row has a neighbor).
    A = (jax.random.uniform(k_a, (N, N)) < 0.15).astype(jnp.float32)
    A = jnp.maximum(A, jnp.eye(N, dtype=jnp.float32))

    out = gat_layer_forward(X, W, att_weights, A, alpha, block=256)
    out = jax.block_until_ready(out)

    ref = _reference(X, W, att_weights, A, alpha)
    assert out.shape == (N, out_dim)
    # bf16 MXU operands -> compare against the f32 reference at bf16-level
    # tolerance (observed error is ~1e-3; threshold leaves ~10x margin).
    assert jnp.allclose(out, ref, atol=1e-2, rtol=5e-2), (
        "mismatch vs JAX reference: max abs err = "
        f"{float(jnp.max(jnp.abs(out - ref)))}")

    print("KERNEL_OK")
</pallas_src>

<mosaic_0001>
module attributes {stable_mosaic.version = 11 : i64} {
  func.func @_h_kernel(%arg0: i32, %arg1: memref<256x64xbf16, #tpu.memory_space<vmem>>, %arg2: memref<64x128xbf16, #tpu.memory_space<vmem>>, %arg3: memref<1x128xf32, #tpu.memory_space<vmem>>, %arg4: memref<256x128xbf16, #tpu.memory_space<vmem>>, %arg5: memref<256x1xf32, #tpu.memory_space<vmem>>) attributes {dimension_semantics = [#tpu.dimension_semantics<parallel>], iteration_bounds = array<i64: 2>, scalar_prefetch = 0 : i64, scratch_operands = 0 : i64, tpu.core_type = #tpu.core_type<tc>, window_params = [{transform_indices = @transform_0, window_bounds = array<i64: 256, 64>}, {pipeline_mode = #tpu.pipeline_mode<synchronous>, transform_indices = @transform_1, window_bounds = array<i64: 64, 128>}, {pipeline_mode = #tpu.pipeline_mode<synchronous>, transform_indices = @transform_2, window_bounds = array<i64: 1, 128>}, {transform_indices = @transform_3, window_bounds = array<i64: 256, 128>}, {transform_indices = @transform_4, window_bounds = array<i64: 256, 1>}]} {
    %c0 = arith.constant 0 : index
    %c0_0 = arith.constant 0 : index
    %0 = vector.load %arg1[%c0, %c0_0] : memref<256x64xbf16, #tpu.memory_space<vmem>>, vector<256x64xbf16>
    %c0_1 = arith.constant 0 : index
    %c0_2 = arith.constant 0 : index
    %1 = vector.load %arg2[%c0_1, %c0_2] : memref<64x128xbf16, #tpu.memory_space<vmem>>, vector<64x128xbf16>
    %cst = arith.constant dense<0.000000e+00> : vector<256x128xf32>
    %2 = tpu.matmul %0, %1, %cst {dimension_numbers = #tpu.dot_dimension_numbers<[1], [0], [0], [1], [0, 0, 1, 1], [], []>} : vector<256x64xbf16>, vector<64x128xbf16>, vector<256x128xf32> -> vector<256x128xf32>
    %c0_3 = arith.constant 0 : index
    %c0_4 = arith.constant 0 : index
    %3 = vector.load %arg3[%c0_3, %c0_4] : memref<1x128xf32, #tpu.memory_space<vmem>>, vector<1x128xf32>
    %4 = vector.broadcast %3 : vector<1x128xf32> to vector<256x128xf32>
    %5 = arith.mulf %2, %4 : vector<256x128xf32>
    %cst_5 = arith.constant dense<0.000000e+00> : vector<256xf32>
    %6 = vector.multi_reduction <add>, %5, %cst_5 [1] : vector<256x128xf32> to vector<256xf32>
    %7 = vector.shape_cast %6 : vector<256xf32> to vector<256x1xf32>
    %cst_6 = arith.constant 0.000000e+00 : f32
    %8 = vector.broadcast %cst_6 : f32 to vector<256x1xf32>
    %9 = arith.cmpf ogt, %7, %8 : vector<256x1xf32>
    %cst_7 = arith.constant 2.000000e-01 : f32
    %10 = vector.broadcast %cst_7 : f32 to vector<256x1xf32>
    %11 = arith.mulf %10, %7 : vector<256x1xf32>
    %12 = arith.select %9, %7, %11 : vector<256x1xi1>, vector<256x1xf32>
    %c0_8 = arith.constant 0 : index
    %c0_9 = arith.constant 0 : index
    %13 = vector.load %arg5[%c0_8, %c0_9] : memref<256x1xf32, #tpu.memory_space<vmem>>, vector<256x1xf32>
    tpu.vector_store %arg5[%c0_8, %c0_9], %12 {strides = array<i32>} : memref<256x1xf32, #tpu.memory_space<vmem>>, vector<256x1xf32>,
    %14 = arith.truncf %2 : vector<256x128xf32> to vector<256x128xbf16>
    %c0_10 = arith.constant 0 : index
    %c0_11 = arith.constant 0 : index
    %15 = vector.load %arg4[%c0_10, %c0_11] : memref<256x128xbf16, #tpu.memory_space<vmem>>, vector<256x128xbf16>
    tpu.vector_store %arg4[%c0_10, %c0_11], %14 {strides = array<i32>} : memref<256x128xbf16, #tpu.memory_space<vmem>>, vector<256x128xbf16>,
    return
  }
  func.func @transform_0(%arg0: i32) -> (i32, i32) {
    %c0_i32 = arith.constant 0 : i32
    %c0_i32_0 = arith.constant 0 : i32
    return %arg0, %c0_i32 : i32, i32
  }
  func.func @transform_1(%arg0: i32) -> (i32, i32) {
    %c0_i32 = arith.constant 0 : i32
    %c0_i32_0 = arith.constant 0 : i32
    %c0_i32_1 = arith.constant 0 : i32
    return %c0_i32, %c0_i32_0 : i32, i32
  }
  func.func @transform_2(%arg0: i32) -> (i32, i32) {
    %c0_i32 = arith.constant 0 : i32
    %c0_i32_0 = arith.constant 0 : i32
    %c0_i32_1 = arith.constant 0 : i32
    return %c0_i32, %c0_i32_0 : i32, i32
  }
  func.func @transform_3(%arg0: i32) -> (i32, i32) {
    %c0_i32 = arith.constant 0 : i32
    %c0_i32_0 = arith.constant 0 : i32
    return %arg0, %c0_i32 : i32, i32
  }
  func.func @transform_4(%arg0: i32) -> (i32, i32) {
    %c0_i32 = arith.constant 0 : i32
    %c0_i32_0 = arith.constant 0 : i32
    return %arg0, %c0_i32 : i32, i32
  }
}

</mosaic_0001>

<llo_original>
// kernel: tpu_custom_call.1
$region0: #{tpu_custom_call.1}
  #allocation0 [shape = 'u32[]', space=smem, size = 0x4, offset = 0x4, fixed_abs, tag = 'smem constant byte address 0x4 - core index']
  #allocation1 [shape = 'u32[72,128]{1,0:T(1,128)}', space=vmem, size = 0x9000, scoped, tag = 'internal scratch']
  %s0 = inlined_call_operand.vmem [shape: bf16[512,64], index: 0, kind: input, shape index: {}]
  %s1 = inlined_call_operand.vmem [shape: bf16[64,128], index: 1, kind: input, shape index: {}]
  %s2 = inlined_call_operand.vmem [shape: f32[1,128], index: 2, kind: input, shape index: {}]
  %s3 = inlined_call_operand.hbm [shape: bf16[512,128], index: 3, kind: output, shape index: {0}]
  %s4 = inlined_call_operand.vmem [shape: f32[512,1], index: 4, kind: output, shape index: {1}]
  %5 = xla_tuple %s3, %s4
  %s6 = sld [smem:[#allocation0]]
  $region53: #{tpu_custom_call.1} parent=0
    _
  %s8 = ssub.s32 1, %s6
  %s9 = scalar_select 0, %s8, %s6
  $region1: #{tpu_custom_call.1} parent=0
    #allocation2 [shape = 'u8[131072]{0}', space=vmem, size = 0x20000, scoped, tag = 'output window, operand 0']
    #allocation3 [shape = 's32[2]{0}', space=sflag, size = 0x8, scoped, tag = 'scoped memory for tpu_custom_call.1']
    %10 = vsyncpa [#allocation3], 0
    %s11 = scalar_lea.sflag [#allocation3], 1
    %12 = vsyncpa %s11, 0
    loop: start=0, step=1, limit=4
    $region2: #{tpu_custom_call.1} parent=1 // loop_pre_header
      _
    $region3: #{tpu_custom_call.1} parent=1 // loop_header
      %s14 = sphi 0, %s18
      %p15 = scmp.ge.s32.totalorder %s14, 4
      %s24 = sphi 0, %s26
      %s27 = sphi 0, %s24
      %s28 = sphi 0, %s27
      %s44 = sphi 0, %s28
      %s48 = sphi 0, %s48
      %s50 = sphi 0, %s48
      %s51 = sphi 0, %s50
      %s65 = sphi 0, %s51
      %s69 = sphi 0, %s69
      %s71 = sphi 0, %s69
      %s72 = sphi 0, %s71
      %s86 = sphi 0, %s72
      %s92 = sphi 0, %s94
      %s95 = sphi 0, %s92
      %s96 = sphi 0, %s95
      %s112 = sphi 0, %s96
      %s118 = sphi 0, %s120
      %s121 = sphi 0, %s118
      %s122 = sphi 0, %s121
      %s138 = sphi 0, %s122
    $region4: #{tpu_custom_call.1} parent=1 // loop_header_branch
      %17 = sbr.rel (%p15) target = $region8
    $region5: #{tpu_custom_call.1} parent=1 // loop_body
      %s19 = ssub.s32 %s14, 1
      %s20 = ssub.s32 %s14, 2
      %s21 = sadd.s32 %s14, 1
      %s22 = ssub.s32 %s14, %s21
      %p23 = scmp.eq.s32.totalorder %s22, 0
      %s25 = sadd.s32 %s24, 1
      %s26 = scalar_select %p23, %s24, %s25
      %p29 = pneg %p23
      %p30 = scmp.eq.s32.totalorder %s14, 1
      %p31 = por %p29, %p30
      %p32 = scmp.ne.s32.totalorder %s24, %s27
      %p33 = scmp.eq.s32.totalorder %s14, 0
      %p34 = por %p32, %p33
      %p35 = scmp.ne.s32.totalorder %s24, %s27
      %p36 = scmp.eq.s32.totalorder %s19, 1
      %p37 = por %p35, %p36
      %p38 = scmp.ne.s32.totalorder %s27, %s28
      %p39 = scmp.eq.s32.totalorder %s19, 0
      %p40 = por %p38, %p39
      %p41 = scmp.ne.s32.totalorder %s27, %s28
      %p42 = scmp.eq.s32.totalorder %s20, 1
      %p43 = por %p41, %p42
      %p45 = scmp.ne.s32.totalorder %s28, %s44
      %p46 = scmp.eq.s32.totalorder %s20, 0
      %p47 = por %p45, %p46
      %s49 = sadd.s32 %s48, 1
      %p52 = scmp.eq.s32.totalorder %s14, 1
      %p53 = scmp.ne.s32.totalorder %s48, %s50
      %p54 = scmp.eq.s32.totalorder %s14, 0
      %p55 = por %p53, %p54
      %p56 = scmp.ne.s32.totalorder %s48, %s50
      %p57 = scmp.eq.s32.totalorder %s19, 1
      %p58 = por %p56, %p57
      %p59 = scmp.ne.s32.totalorder %s50, %s51
      %p60 = scmp.eq.s32.totalorder %s19, 0
      %p61 = por %p59, %p60
      %p62 = scmp.ne.s32.totalorder %s50, %s51
      %p63 = scmp.eq.s32.totalorder %s20, 1
      %p64 = por %p62, %p63
      %p66 = scmp.ne.s32.totalorder %s51, %s65
      %p67 = scmp.eq.s32.totalorder %s20, 0
      %p68 = por %p66, %p67
      %s70 = sadd.s32 %s69, 1
      %p73 = scmp.eq.s32.totalorder %s14, 1
      %p74 = scmp.ne.s32.totalorder %s69, %s71
      %p75 = scmp.eq.s32.totalorder %s14, 0
      %p76 = por %p74, %p75
      %p77 = scmp.ne.s32.totalorder %s69, %s71
      %p78 = scmp.eq.s32.totalorder %s19, 1
      %p79 = por %p77, %p78
      %p80 = scmp.ne.s32.totalorder %s71, %s72
      %p81 = scmp.eq.s32.totalorder %s19, 0
      %p82 = por %p80, %p81
      %p83 = scmp.ne.s32.totalorder %s71, %s72
      %p84 = scmp.eq.s32.totalorder %s20, 1
      %p85 = por %p83, %p84
      %p87 = scmp.ne.s32.totalorder %s72, %s86
      %p88 = scmp.eq.s32.totalorder %s20, 0
      %p89 = por %p87, %p88
      %s90 = ssub.s32 %s14, %s21
      %p91 = scmp.eq.s32.totalorder %s90, 0
      %s93 = sadd.s32 %s92, 1
      %s94 = scalar_select %p91, %s92, %s93
      %p97 = pneg %p91
      %p98 = scmp.eq.s32.totalorder %s14, 1
      %p99 = por %p97, %p98
      %p100 = scmp.ne.s32.totalorder %s92, %s95
      %p101 = scmp.eq.s32.totalorder %s14, 0
      %p102 = por %p100, %p101
      %p103 = scmp.ne.s32.totalorder %s92, %s95
      %p104 = scmp.eq.s32.totalorder %s19, 1
      %p105 = por %p103, %p104
      %p106 = scmp.ne.s32.totalorder %s95, %s96
      %p107 = scmp.eq.s32.totalorder %s19, 0
      %p108 = por %p106, %p107
      %p109 = scmp.ne.s32.totalorder %s95, %s96
      %p110 = scmp.eq.s32.totalorder %s20, 1
      %p111 = por %p109, %p110
      %p113 = scmp.ne.s32.totalorder %s96, %s112
      %p114 = scmp.eq.s32.totalorder %s20, 0
      %p115 = por %p113, %p114
      %s116 = ssub.s32 %s14, %s21
      %p117 = scmp.eq.s32.totalorder %s116, 0
      %s119 = sadd.s32 %s118, 1
      %s120 = scalar_select %p117, %s118, %s119
      %p123 = pneg %p117
      %p124 = scmp.eq.s32.totalorder %s14, 1
      %p125 = por %p123, %p124
      %p126 = scmp.ne.s32.totalorder %s118, %s121
      %p127 = scmp.eq.s32.totalorder %s14, 0
      %p128 = por %p126, %p127
      %p129 = scmp.ne.s32.totalorder %s118, %s121
      %p130 = scmp.eq.s32.totalorder %s19, 1
      %p131 = por %p129, %p130
      %p132 = scmp.ne.s32.totalorder %s121, %s122
      %p133 = scmp.eq.s32.totalorder %s19, 0
      %p134 = por %p132, %p133
      %p135 = scmp.ne.s32.totalorder %s121, %s122
      %p136 = scmp.eq.s32.totalorder %s20, 1
      %p137 = por %p135, %p136
      %p139 = scmp.ne.s32.totalorder %s122, %s138
      %p140 = scmp.eq.s32.totalorder %s20, 0
      %p141 = por %p139, %p140
      %p142 = scmp.le.s32.totalorder 1, %s14
      %p143 = scmp.lt.s32.totalorder %s14, 3
      %p144 = pnand %p142, %p143
      %p145 = pneg %p144
      // Predicated region
      $region9: #{tpu_custom_call.1} parent=5 // pred_check
        _
      $region10: #{tpu_custom_call.1} parent=5 // pred_check_branch
        %147 = sbr.rel (%p144) target = $region12
      $region11: #{tpu_custom_call.1} parent=5 // pred_region
        %s148 = ssub.s32 %s14, 1
        // Predicated region
        $region13: #{tpu_custom_call.1} parent=11 // pred_check
          %p149 = pneg %p61
        $region14: #{tpu_custom_call.1} parent=11 // pred_check_branch
          %151 = sbr.rel (%p149) target = $region16
        $region15: #{tpu_custom_call.1} parent=11 // pred_region
          _
        $region16: #{tpu_custom_call.1} parent=11 // pred_fallthru
          _
        // Predicated region
        $region17: #{tpu_custom_call.1} parent=11 // pred_check
          %p152 = pneg %p82
        $region18: #{tpu_custom_call.1} parent=11 // pred_check_branch
          %154 = sbr.rel (%p152) target = $region20
        $region19: #{tpu_custom_call.1} parent=11 // pred_region
          _
        $region20: #{tpu_custom_call.1} parent=11 // pred_fallthru
          _
      $region12: #{tpu_custom_call.1} parent=5 // pred_fallthru
        _
      %p155 = scmp.lt.s32.totalorder %s14, 2
      // Predicated region
      $region21: #{tpu_custom_call.1} parent=5 // pred_check
        %p156 = pneg %p155
      $region22: #{tpu_custom_call.1} parent=5 // pred_check_branch
        %158 = sbr.rel (%p156) target = $region24
      $region23: #{tpu_custom_call.1} parent=5 // pred_region
        // Predicated region
        $region25: #{tpu_custom_call.1} parent=23 // pred_check
          %p159 = pneg %p34
        $region26: #{tpu_custom_call.1} parent=23 // pred_check_branch
          %161 = sbr.rel (%p159) target = $region28
        $region27: #{tpu_custom_call.1} parent=23 // pred_region
          %s162 = smul.u32 32, %s14
          %p163 = scmp.lt.s32.totalorder %s162, 63
          %s164 = scalar_select %p163, %s162, 63
          %s165 = smul.addr %s164, 4
          %s166 = scalar_lea.vmem %s0, %s165
          %s167 = smul.u32 32, %s14
        $region28: #{tpu_custom_call.1} parent=23 // pred_fallthru
          _
      $region24: #{tpu_custom_call.1} parent=5 // pred_fallthru
        _
      %p168 = scmp.le.s32.totalorder 1, %s14
      %p169 = scmp.lt.s32.totalorder %s14, 3
      %p170 = pnand %p168, %p169
      %p171 = pneg %p170
      // Predicated region
      $region29: #{tpu_custom_call.1} parent=5 // pred_check
        _
      $region30: #{tpu_custom_call.1} parent=5 // pred_check_branch
        %173 = sbr.rel (%p170) target = $region32
      $region31: #{tpu_custom_call.1} parent=5 // pred_region
        %s174 = ssub.s32 %s14, 1
        %s175 = smul.u32 32, %s19
        %p176 = scmp.lt.s32.totalorder %s175, 63
        %s177 = scalar_select %p176, %s175, 63
        %s178 = smul.addr %s177, 4
        %s179 = scalar_lea.vmem %s0, %s178
        %p180 = pneg %p40
        %p181 = pneg %p37
        %p182 = pneg %p61
        %p183 = pneg %p58
        %p184 = pneg %p82
        %p185 = pneg %p79
        %p186 = pneg %p108
        %p187 = pneg %p105
        %s188 = sand.u32 %s95, 1
        %s189 = scalar_lea.sflag [#allocation3], %s188
        %s190 = sand.u32 %s95, 1
        %s191 = smul.addr %s190, 128
        %s192 = scalar_lea.vmem [#allocation2], %s191
        %p193 = pneg %p134
        %p194 = pneg %p131
        %s195 = smul.u32 32, %s19
        %p196 = scmp.lt.s32.totalorder %s195, 63
        %s197 = scalar_select %p196, %s195, 63
        %s198 = smul.addr %s197, 8
        %s199 = scalar_lea.vmem %s4, %s198
        %s200 = smul.u32 32, %s19
        %p201 = scmp.lt.s32.totalorder %s200, 63
        %s202 = scalar_select %p201, %s200, 63
        %s203 = smul.addr %s202, 4
        %s204 = scalar_lea.vmem %s0, %s203
        %s205 = smul.u32 32, %s19
        %s206 = smul.u32 32, %s19
        %s207 = smul.u32 32, %s19
        %p208 = scmp.lt.s32.totalorder %s207, 63
        %s209 = scalar_select %p208, %s207, 63
        %s210 = smul.addr %s209, 8
        %s211 = scalar_lea.vmem %s4, %s210
        %s212 = smul.u32 32, %s19
        %v214 = vld [vmem:[%s204] sm:$0xf]
        %v215 = vld [vmem:[%s204 + $0x4] sm:$0xf]
        %v216 = vld [vmem:[%s204 + $0x8] sm:$0xf]
        %v217 = vld [vmem:[%s204 + $0xc] sm:$0xf]
        %v218 = vld [vmem:[%s204 + $0x10] sm:$0xf]
        %v219 = vld [vmem:[%s204 + $0x14] sm:$0xf]
        %v220 = vld [vmem:[%s204 + $0x18] sm:$0xf]
        %v221 = vld [vmem:[%s204 + $0x1c] sm:$0xf]
        %v222 = vld [vmem:[%s204 + $0x20] sm:$0xf]
        %v223 = vld [vmem:[%s204 + $0x24] sm:$0xf]
        %v224 = vld [vmem:[%s204 + $0x28] sm:$0xf]
        %v225 = vld [vmem:[%s204 + $0x2c] sm:$0xf]
        %v226 = vld [vmem:[%s204 + $0x30] sm:$0xf]
        %v227 = vld [vmem:[%s204 + $0x34] sm:$0xf]
        %v228 = vld [vmem:[%s204 + $0x38] sm:$0xf]
        %v229 = vld [vmem:[%s204 + $0x3c] sm:$0xf]
        %v230 = vld [vmem:[%s204 + $0x40] sm:$0xf]
        %v231 = vld [vmem:[%s204 + $0x44] sm:$0xf]
        %v232 = vld [vmem:[%s204 + $0x48] sm:$0xf]
        %v233 = vld [vmem:[%s204 + $0x4c] sm:$0xf]
        %v234 = vld [vmem:[%s204 + $0x50] sm:$0xf]
        %v235 = vld [vmem:[%s204 + $0x54] sm:$0xf]
        %v236 = vld [vmem:[%s204 + $0x58] sm:$0xf]
        %v237 = vld [vmem:[%s204 + $0x5c] sm:$0xf]
        %v238 = vld [vmem:[%s204 + $0x60] sm:$0xf]
        %v239 = vld [vmem:[%s204 + $0x64] sm:$0xf]
        %v240 = vld [vmem:[%s204 + $0x68] sm:$0xf]
        %v241 = vld [vmem:[%s204 + $0x6c] sm:$0xf]
        %v242 = vld [vmem:[%s204 + $0x70] sm:$0xf]
        %v243 = vld [vmem:[%s204 + $0x74] sm:$0xf]
        %v244 = vld [vmem:[%s204 + $0x78] sm:$0xf]
        %v245 = vld [vmem:[%s204 + $0x7c] sm:$0xf]
        %v246 = vld [vmem:[%s1] sm:$0xf]
        %v247 = vld [vmem:[%s1 + $0x4] sm:$0xf]
        %v248 = vld [vmem:[%s1 + $0x8] sm:$0xf]
        %v249 = vld [vmem:[%s1 + $0xc] sm:$0xf]
        %v250 = vld [vmem:[%s1 + $0x10] sm:$0xf]
        %v251 = vld [vmem:[%s1 + $0x14] sm:$0xf]
        %v252 = vld [vmem:[%s1 + $0x18] sm:$0xf]
        %v253 = vld [vmem:[%s1 + $0x1c] sm:$0xf]
        %v286 = vunpack.c.l.b16 %v214
        %v287 = vunpack.c.l.b16 %v215
        %v288 = vunpack.c.l.b16 %v216
        %v289 = vunpack.c.l.b16 %v217
        %v290 = vunpack.c.l.b16 %v218
        %v291 = vunpack.c.l.b16 %v219
        %v292 = vunpack.c.l.b16 %v220
        %v293 = vunpack.c.l.b16 %v221
        %v294 = vunpack.c.l.b16 %v222
        %v295 = vunpack.c.l.b16 %v223
        %v296 = vunpack.c.l.b16 %v224
        %v297 = vunpack.c.l.b16 %v225
        %v298 = vunpack.c.l.b16 %v226
        %v299 = vunpack.c.l.b16 %v227
        %v300 = vunpack.c.l.b16 %v228
        %v301 = vunpack.c.l.b16 %v229
        %v302 = vunpack.c.l.b16 %v230
        %v303 = vunpack.c.l.b16 %v231
        %v304 = vunpack.c.l.b16 %v232
        %v305 = vunpack.c.l.b16 %v233
        %v306 = vunpack.c.l.b16 %v234
        %v307 = vunpack.c.l.b16 %v235
        %v308 = vunpack.c.l.b16 %v236
        %v309 = vunpack.c.l.b16 %v237
        %v310 = vunpack.c.l.b16 %v238
        %v311 = vunpack.c.l.b16 %v239
        %v312 = vunpack.c.l.b16 %v240
        %v313 = vunpack.c.l.b16 %v241
        %v314 = vunpack.c.l.b16 %v242
        %v315 = vunpack.c.l.b16 %v243
        %v316 = vunpack.c.l.b16 %v244
        %v317 = vunpack.c.l.b16 %v245
        %v318 = vpack.c.b16 %v287, %v286
        %v319 = vpack.c.b16 %v289, %v288
        %v320 = vpack.c.b16 %v291, %v290
        %v321 = vpack.c.b16 %v293, %v292
        %v322 = vpack.c.b16 %v295, %v294
        %v323 = vpack.c.b16 %v297, %v296
        %v324 = vpack.c.b16 %v299, %v298
        %v325 = vpack.c.b16 %v301, %v300
        %v326 = vpack.c.b16 %v303, %v302
        %v327 = vpack.c.b16 %v305, %v304
        %v328 = vpack.c.b16 %v307, %v306
        %v329 = vpack.c.b16 %v309, %v308
        %v330 = vpack.c.b16 %v311, %v310
        %v331 = vpack.c.b16 %v313, %v312
        %v332 = vpack.c.b16 %v315, %v314
        %v333 = vpack.c.b16 %v317, %v316
        %v342 = vunpack.c.l.b16 %v246
        %v343 = vunpack.c.l.b16 %v247
        %v344 = vunpack.c.l.b16 %v248
        %v345 = vunpack.c.l.b16 %v249
        %v346 = vunpack.c.l.b16 %v250
        %v347 = vunpack.c.l.b16 %v251
        %v348 = vunpack.c.l.b16 %v252
        %v349 = vunpack.c.l.b16 %v253
        %v350 = vpack.c.b16 %v343, %v342
        %v351 = vpack.c.b16 %v345, %v344
        %v352 = vpack.c.b16 %v347, %v346
        %v353 = vpack.c.b16 %v349, %v348
        %vm358 = vcmask 523264
        %v360 = vsel %vm358, %v318, 0
        %v363 = vsel %vm358, %v319, 0
        %v366 = vsel %vm358, %v320, 0
        %v369 = vsel %vm358, %v321, 0
        %v372 = vsel %vm358, %v322, 0
        %v375 = vsel %vm358, %v323, 0
        %v378 = vsel %vm358, %v324, 0
        %v381 = vsel %vm358, %v325, 0
        %v384 = vsel %vm358, %v326, 0
        %v387 = vsel %vm358, %v327, 0
        %v390 = vsel %vm358, %v328, 0
        %v393 = vsel %vm358, %v329, 0
        %v396 = vsel %vm358, %v330, 0
        %v399 = vsel %vm358, %v331, 0
        %v402 = vsel %vm358, %v332, 0
        %v405 = vsel %vm358, %v333, 0
        %407 = vmatpush.bf16.msra.mxu0 0
        %408 = vmatpush.bf16.msra.mxu0 0
        %409 = vmatpush.bf16.msra.mxu0 0
        %410 = vmatpush.bf16.msra.mxu0 0
        %411 = vmatpush.bf16.msra.mxu0 %v353
        %412 = vmatpush.bf16.msra.mxu0 %v352
        %413 = vmatpush.bf16.msra.mxu0 %v351
        %414 = vmatpush.bf16.msra.mxu0 %v350
        %415 = vmatmul.bf16.gmra.mxu0 %v360
        %v416 = vpop.f32.mrf.mxu0
        %v417 = vadd.f32 0.0, %v416
        %v418 = vpop.f32.mrf.mxu0
        %v419 = vadd.f32 0.0, %v418
        %420 = vmatmul.bf16.gmra.mxu0 %v363
        %v421 = vpop.f32.mrf.mxu0
        %v422 = vadd.f32 0.0, %v421
        %v423 = vpop.f32.mrf.mxu0
        %v424 = vadd.f32 0.0, %v423
        %425 = vmatmul.bf16.gmra.mxu0 %v366
        %v426 = vpop.f32.mrf.mxu0
        %v427 = vadd.f32 0.0, %v426
        %v428 = vpop.f32.mrf.mxu0
        %v429 = vadd.f32 0.0, %v428
        %430 = vmatmul.bf16.gmra.mxu0 %v369
        %v431 = vpop.f32.mrf.mxu0
        %v432 = vadd.f32 0.0, %v431
        %v433 = vpop.f32.mrf.mxu0
        %v434 = vadd.f32 0.0, %v433
        %435 = vmatmul.bf16.gmra.mxu0 %v372
        %v436 = vpop.f32.mrf.mxu0
        %v437 = vadd.f32 0.0, %v436
        %v438 = vpop.f32.mrf.mxu0
        %v439 = vadd.f32 0.0, %v438
        %440 = vmatmul.bf16.gmra.mxu0 %v375
        %v441 = vpop.f32.mrf.mxu0
        %v442 = vadd.f32 0.0, %v441
        %v443 = vpop.f32.mrf.mxu0
        %v444 = vadd.f32 0.0, %v443
        %445 = vmatmul.bf16.gmra.mxu0 %v378
        %v446 = vpop.f32.mrf.mxu0
        %v447 = vadd.f32 0.0, %v446
        %v448 = vpop.f32.mrf.mxu0
        %v449 = vadd.f32 0.0, %v448
        %450 = vmatmul.bf16.gmra.mxu0 %v381
        %v451 = vpop.f32.mrf.mxu0
        %v452 = vadd.f32 0.0, %v451
        %v453 = vpop.f32.mrf.mxu0
        %v454 = vadd.f32 0.0, %v453
        %455 = vmatmul.bf16.gmra.mxu0 %v384
        %v456 = vpop.f32.mrf.mxu0
        %v457 = vadd.f32 0.0, %v456
        %v458 = vpop.f32.mrf.mxu0
        %v459 = vadd.f32 0.0, %v458
        %460 = vmatmul.bf16.gmra.mxu0 %v387
        %v461 = vpop.f32.mrf.mxu0
        %v462 = vadd.f32 0.0, %v461
        %v463 = vpop.f32.mrf.mxu0
        %v464 = vadd.f32 0.0, %v463
        %465 = vmatmul.bf16.gmra.mxu0 %v390
        %v466 = vpop.f32.mrf.mxu0
        %v467 = vadd.f32 0.0, %v466
        %v468 = vpop.f32.mrf.mxu0
        %v469 = vadd.f32 0.0, %v468
        %470 = vmatmul.bf16.gmra.mxu0 %v393
        %v471 = vpop.f32.mrf.mxu0
        %v472 = vadd.f32 0.0, %v471
        %v473 = vpop.f32.mrf.mxu0
        %v474 = vadd.f32 0.0, %v473
        %475 = vmatmul.bf16.gmra.mxu0 %v396
        %v476 = vpop.f32.mrf.mxu0
        %v477 = vadd.f32 0.0, %v476
        %v478 = vpop.f32.mrf.mxu0
        %v479 = vadd.f32 0.0, %v478
        %480 = vmatmul.bf16.gmra.mxu0 %v399
        %v481 = vpop.f32.mrf.mxu0
        %v482 = vadd.f32 0.0, %v481
        %v483 = vpop.f32.mrf.mxu0
        %v484 = vadd.f32 0.0, %v483
        %485 = vmatmul.bf16.gmra.mxu0 %v402
        %v486 = vpop.f32.mrf.mxu0
        %v487 = vadd.f32 0.0, %v486
        %v488 = vpop.f32.mrf.mxu0
        %v489 = vadd.f32 0.0, %v488
        %490 = vmatmul.bf16.gmra.mxu0 %v405
        %v491 = vpop.f32.mrf.mxu0
        %v492 = vadd.f32 0.0, %v491
        %v493 = vpop.f32.mrf.mxu0
        %v494 = vadd.f32 0.0, %v493
        %495 = vdwg.mxu0
        %v496 = vld [vmem:[%s2] sm:$0x1]
        %v498 = vperm.slane %v496, 0
        %v500 = vmul.f32 %v417, %v498
        %v501 = vmul.f32 %v419, %v498
        %v502 = vmul.f32 %v422, %v498
        %v503 = vmul.f32 %v424, %v498
        %v504 = vmul.f32 %v427, %v498
        %v505 = vmul.f32 %v429, %v498
        %v506 = vmul.f32 %v432, %v498
        %v507 = vmul.f32 %v434, %v498
        %v508 = vmul.f32 %v437, %v498
        %v509 = vmul.f32 %v439, %v498
        %v510 = vmul.f32 %v442, %v498
        %v511 = vmul.f32 %v444, %v498
        %v512 = vmul.f32 %v447, %v498
        %v513 = vmul.f32 %v449, %v498
        %v514 = vmul.f32 %v452, %v498
        %v515 = vmul.f32 %v454, %v498
        %v516 = vmul.f32 %v457, %v498
        %v517 = vmul.f32 %v459, %v498
        %v518 = vmul.f32 %v462, %v498
        %v519 = vmul.f32 %v464, %v498
        %v520 = vmul.f32 %v467, %v498
        %v521 = vmul.f32 %v469, %v498
        %v522 = vmul.f32 %v472, %v498
        %v523 = vmul.f32 %v474, %v498
        %v524 = vmul.f32 %v477, %v498
        %v525 = vmul.f32 %v479, %v498
        %v526 = vmul.f32 %v482, %v498
        %v527 = vmul.f32 %v484, %v498
        %v528 = vmul.f32 %v487, %v498
        %v529 = vmul.f32 %v489, %v498
        %v530 = vmul.f32 %v492, %v498
        %v531 = vmul.f32 %v494, %v498
        %532 = vadd.xlane.f32.xlu0 %v500
        %v533 = vpop.xlane.xlu0 %532
        %534 = vadd.xlane.f32.xlu0 %v501
        %v535 = vpop.xlane.xlu0 %534
        %536 = vadd.xlane.f32.xlu0 %v502
        %v537 = vpop.xlane.xlu0 %536
        %538 = vadd.xlane.f32.xlu0 %v503
        %v539 = vpop.xlane.xlu0 %538
        %540 = vadd.xlane.f32.xlu0 %v504
        %v541 = vpop.xlane.xlu0 %540
        %542 = vadd.xlane.f32.xlu0 %v505
        %v543 = vpop.xlane.xlu0 %542
        %544 = vadd.xlane.f32.xlu0 %v506
        %v545 = vpop.xlane.xlu0 %544
        %546 = vadd.xlane.f32.xlu0 %v507
        %v547 = vpop.xlane.xlu0 %546
        %548 = vadd.xlane.f32.xlu0 %v508
        %v549 = vpop.xlane.xlu0 %548
        %550 = vadd.xlane.f32.xlu0 %v509
        %v551 = vpop.xlane.xlu0 %550
        %552 = vadd.xlane.f32.xlu0 %v510
        %v553 = vpop.xlane.xlu0 %552
        %554 = vadd.xlane.f32.xlu0 %v511
        %v555 = vpop.xlane.xlu0 %554
        %556 = vadd.xlane.f32.xlu0 %v512
        %v557 = vpop.xlane.xlu0 %556
        %558 = vadd.xlane.f32.xlu0 %v513
        %v559 = vpop.xlane.xlu0 %558
        %560 = vadd.xlane.f32.xlu0 %v514
        %v561 = vpop.xlane.xlu0 %560
        %562 = vadd.xlane.f32.xlu0 %v515
        %v563 = vpop.xlane.xlu0 %562
        %564 = vadd.xlane.f32.xlu0 %v516
        %v565 = vpop.xlane.xlu0 %564
        %566 = vadd.xlane.f32.xlu0 %v517
        %v567 = vpop.xlane.xlu0 %566
        %568 = vadd.xlane.f32.xlu0 %v518
        %v569 = vpop.xlane.xlu0 %568
        %570 = vadd.xlane.f32.xlu0 %v519
        %v571 = vpop.xlane.xlu0 %570
        %572 = vadd.xlane.f32.xlu0 %v520
        %v573 = vpop.xlane.xlu0 %572
        %574 = vadd.xlane.f32.xlu0 %v521
        %v575 = vpop.xlane.xlu0 %574
        %576 = vadd.xlane.f32.xlu0 %v522
        %v577 = vpop.xlane.xlu0 %576
        %578 = vadd.xlane.f32.xlu0 %v523
        %v579 = vpop.xlane.xlu0 %578
        %580 = vadd.xlane.f32.xlu0 %v524
        %v581 = vpop.xlane.xlu0 %580
        %582 = vadd.xlane.f32.xlu0 %v525
        %v583 = vpop.xlane.xlu0 %582
        %584 = vadd.xlane.f32.xlu0 %v526
        %v585 = vpop.xlane.xlu0 %584
        %586 = vadd.xlane.f32.xlu0 %v527
        %v587 = vpop.xlane.xlu0 %586
        %588 = vadd.xlane.f32.xlu0 %v528
        %v589 = vpop.xlane.xlu0 %588
        %590 = vadd.xlane.f32.xlu0 %v529
        %v591 = vpop.xlane.xlu0 %590
        %592 = vadd.xlane.f32.xlu0 %v530
        %v593 = vpop.xlane.xlu0 %592
        %594 = vadd.xlane.f32.xlu0 %v531
        %v595 = vpop.xlane.xlu0 %594
        %vm596 = vcmp.gt.f32.partialorder %v533, 0.0
        %vm597 = vcmp.gt.f32.partialorder %v535, 0.0
        %vm598 = vcmp.gt.f32.partialorder %v537, 0.0
        %vm599 = vcmp.gt.f32.partialorder %v539, 0.0
        %vm600 = vcmp.gt.f32.partialorder %v541, 0.0
        %vm601 = vcmp.gt.f32.partialorder %v543, 0.0
        %vm602 = vcmp.gt.f32.partialorder %v545, 0.0
        %vm603 = vcmp.gt.f32.partialorder %v547, 0.0
        %vm604 = vcmp.gt.f32.partialorder %v549, 0.0
        %vm605 = vcmp.gt.f32.partialorder %v551, 0.0
        %vm606 = vcmp.gt.f32.partialorder %v553, 0.0
        %vm607 = vcmp.gt.f32.partialorder %v555, 0.0
        %vm608 = vcmp.gt.f32.partialorder %v557, 0.0
        %vm609 = vcmp.gt.f32.partialorder %v559, 0.0
        %vm610 = vcmp.gt.f32.partialorder %v561, 0.0
        %vm611 = vcmp.gt.f32.partialorder %v563, 0.0
        %vm612 = vcmp.gt.f32.partialorder %v565, 0.0
        %vm613 = vcmp.gt.f32.partialorder %v567, 0.0
        %vm614 = vcmp.gt.f32.partialorder %v569, 0.0
        %vm615 = vcmp.gt.f32.partialorder %v571, 0.0
        %vm616 = vcmp.gt.f32.partialorder %v573, 0.0
        %vm617 = vcmp.gt.f32.partialorder %v575, 0.0
        %vm618 = vcmp.gt.f32.partialorder %v577, 0.0
        %vm619 = vcmp.gt.f32.partialorder %v579, 0.0
        %vm620 = vcmp.gt.f32.partialorder %v581, 0.0
        %vm621 = vcmp.gt.f32.partialorder %v583, 0.0
        %vm622 = vcmp.gt.f32.partialorder %v585, 0.0
        %vm623 = vcmp.gt.f32.partialorder %v587, 0.0
        %vm624 = vcmp.gt.f32.partialorder %v589, 0.0
        %vm625 = vcmp.gt.f32.partialorder %v591, 0.0
        %vm626 = vcmp.gt.f32.partialorder %v593, 0.0
        %vm627 = vcmp.gt.f32.partialorder %v595, 0.0
        %v628 = vmul.f32 %v533, 0.2
        %v629 = vmul.f32 %v535, 0.2
        %v630 = vmul.f32 %v537, 0.2
        %v631 = vmul.f32 %v539, 0.2
        %v632 = vmul.f32 %v541, 0.2
        %v633 = vmul.f32 %v543, 0.2
        %v634 = vmul.f32 %v545, 0.2
        %v635 = vmul.f32 %v547, 0.2
        %v636 = vmul.f32 %v549, 0.2
        %v637 = vmul.f32 %v551, 0.2
        %v638 = vmul.f32 %v553, 0.2
        %v639 = vmul.f32 %v555, 0.2
        %v640 = vmul.f32 %v557, 0.2
        %v641 = vmul.f32 %v559, 0.2
        %v642 = vmul.f32 %v561, 0.2
        %v643 = vmul.f32 %v563, 0.2
        %v644 = vmul.f32 %v565, 0.2
        %v645 = vmul.f32 %v567, 0.2
        %v646 = vmul.f32 %v569, 0.2
        %v647 = vmul.f32 %v571, 0.2
        %v648 = vmul.f32 %v573, 0.2
        %v649 = vmul.f32 %v575, 0.2
        %v650 = vmul.f32 %v577, 0.2
        %v651 = vmul.f32 %v579, 0.2
        %v652 = vmul.f32 %v581, 0.2
        %v653 = vmul.f32 %v583, 0.2
        %v654 = vmul.f32 %v585, 0.2
        %v655 = vmul.f32 %v587, 0.2
        %v656 = vmul.f32 %v589, 0.2
        %v657 = vmul.f32 %v591, 0.2
        %v658 = vmul.f32 %v593, 0.2
        %v659 = vmul.f32 %v595, 0.2
        %v660 = vsel %vm596, %v533, %v628
        %v661 = vsel %vm597, %v535, %v629
        %v662 = vsel %vm598, %v537, %v630
        %v663 = vsel %vm599, %v539, %v631
        %v664 = vsel %vm600, %v541, %v632
        %v665 = vsel %vm601, %v543, %v633
        %v666 = vsel %vm602, %v545, %v634
        %v667 = vsel %vm603, %v547, %v635
        %v668 = vsel %vm604, %v549, %v636
        %v669 = vsel %vm605, %v551, %v637
        %v670 = vsel %vm606, %v553, %v638
        %v671 = vsel %vm607, %v555, %v639
        %v672 = vsel %vm608, %v557, %v640
        %v673 = vsel %vm609, %v559, %v641
        %v674 = vsel %vm610, %v561, %v642
        %v675 = vsel %vm611, %v563, %v643
        %v676 = vsel %vm612, %v565, %v644
        %v677 = vsel %vm613, %v567, %v645
        %v678 = vsel %vm614, %v569, %v646
        %v679 = vsel %vm615, %v571, %v647
        %v680 = vsel %vm616, %v573, %v648
        %v681 = vsel %vm617, %v575, %v649
        %v682 = vsel %vm618, %v577, %v650
        %v683 = vsel %vm619, %v579, %v651
        %v684 = vsel %vm620, %v581, %v652
        %v685 = vsel %vm621, %v583, %v653
        %v686 = vsel %vm622, %v585, %v654
        %v687 = vsel %vm623, %v587, %v655
        %v688 = vsel %vm624, %v589, %v656
        %v689 = vsel %vm625, %v591, %v657
        %v690 = vsel %vm626, %v593, %v658
        %v691 = vsel %vm627, %v595, %v659
        %vm692 = vcmask 7168
        %693 = vst.msk [vmem:[%s211] sm:$0xff] %vm692, %v660
        %694 = vst.msk [vmem:[%s211 + $0x8] sm:$0xff] %vm692, %v661
        %695 = vst.msk [vmem:[%s211 + $0x10] sm:$0xff] %vm692, %v662
        %696 = vst.msk [vmem:[%s211 + $0x18] sm:$0xff] %vm692, %v663
        %697 = vst.msk [vmem:[%s211 + $0x20] sm:$0xff] %vm692, %v664
        %698 = vst.msk [vmem:[%s211 + $0x28] sm:$0xff] %vm692, %v665
        %699 = vst.msk [vmem:[%s211 + $0x30] sm:$0xff] %vm692, %v666
        %700 = vst.msk [vmem:[%s211 + $0x38] sm:$0xff] %vm692, %v667
        %701 = vst.msk [vmem:[%s211 + $0x40] sm:$0xff] %vm692, %v668
        %702 = vst.msk [vmem:[%s211 + $0x48] sm:$0xff] %vm692, %v669
        %703 = vst.msk [vmem:[%s211 + $0x50] sm:$0xff] %vm692, %v670
        %704 = vst.msk [vmem:[%s211 + $0x58] sm:$0xff] %vm692, %v671
        %705 = vst.msk [vmem:[%s211 + $0x60] sm:$0xff] %vm692, %v672
        %706 = vst.msk [vmem:[%s211 + $0x68] sm:$0xff] %vm692, %v673
        %707 = vst.msk [vmem:[%s211 + $0x70] sm:$0xff] %vm692, %v674
        %708 = vst.msk [vmem:[%s211 + $0x78] sm:$0xff] %vm692, %v675
        %709 = vst.msk [vmem:[%s211 + $0x80] sm:$0xff] %vm692, %v676
        %710 = vst.msk [vmem:[%s211 + $0x88] sm:$0xff] %vm692, %v677
        %711 = vst.msk [vmem:[%s211 + $0x90] sm:$0xff] %vm692, %v678
        %712 = vst.msk [vmem:[%s211 + $0x98] sm:$0xff] %vm692, %v679
        %713 = vst.msk [vmem:[%s211 + $0xa0] sm:$0xff] %vm692, %v680
        %714 = vst.msk [vmem:[%s211 + $0xa8] sm:$0xff] %vm692, %v681
        %715 = vst.msk [vmem:[%s211 + $0xb0] sm:$0xff] %vm692, %v682
        %716 = vst.msk [vmem:[%s211 + $0xb8] sm:$0xff] %vm692, %v683
        %717 = vst.msk [vmem:[%s211 + $0xc0] sm:$0xff] %vm692, %v684
        %718 = vst.msk [vmem:[%s211 + $0xc8] sm:$0xff] %vm692, %v685
        %719 = vst.msk [vmem:[%s211 + $0xd0] sm:$0xff] %vm692, %v686
        %720 = vst.msk [vmem:[%s211 + $0xd8] sm:$0xff] %vm692, %v687
        %721 = vst.msk [vmem:[%s211 + $0xe0] sm:$0xff] %vm692, %v688
        %722 = vst.msk [vmem:[%s211 + $0xe8] sm:$0xff] %vm692, %v689
        %723 = vst.msk [vmem:[%s211 + $0xf0] sm:$0xff] %vm692, %v690
        %724 = vst.msk [vmem:[%s211 + $0xf8] sm:$0xff] %vm692, %v691
        %v725 = vpack.c.bf16 %v417, %v417
        %v726 = vpack.c.bf16 %v419, %v419
        %v727 = vpack.c.bf16 %v422, %v422
        %v728 = vpack.c.bf16 %v424, %v424
        %v729 = vpack.c.bf16 %v427, %v427
        %v730 = vpack.c.bf16 %v429, %v429
        %v731 = vpack.c.bf16 %v432, %v432
        %v732 = vpack.c.bf16 %v434, %v434
        %v733 = vpack.c.bf16 %v437, %v437
        %v734 = vpack.c.bf16 %v439, %v439
        %v735 = vpack.c.bf16 %v442, %v442
        %v736 = vpack.c.bf16 %v444, %v444
        %v737 = vpack.c.bf16 %v447, %v447
        %v738 = vpack.c.bf16 %v449, %v449
        %v739 = vpack.c.bf16 %v452, %v452
        %v740 = vpack.c.bf16 %v454, %v454
        %v741 = vpack.c.bf16 %v457, %v457
        %v742 = vpack.c.bf16 %v459, %v459
        %v743 = vpack.c.bf16 %v462, %v462
        %v744 = vpack.c.bf16 %v464, %v464
        %v745 = vpack.c.bf16 %v467, %v467
        %v746 = vpack.c.bf16 %v469, %v469
        %v747 = vpack.c.bf16 %v472, %v472
        %v748 = vpack.c.bf16 %v474, %v474
        %v749 = vpack.c.bf16 %v477, %v477
        %v750 = vpack.c.bf16 %v479, %v479
        %v751 = vpack.c.bf16 %v482, %v482
        %v752 = vpack.c.bf16 %v484, %v484
        %v753 = vpack.c.bf16 %v487, %v487
        %v754 = vpack.c.bf16 %v489, %v489
        %v755 = vpack.c.bf16 %v492, %v492
        %v756 = vpack.c.bf16 %v494, %v494
        %757 = vst [vmem:[%s192] sm:$0xf] %v725
        %758 = vst [vmem:[%s192 + $0x4] sm:$0xf] %v726
        %759 = vst [vmem:[%s192 + $0x8] sm:$0xf] %v727
        %760 = vst [vmem:[%s192 + $0xc] sm:$0xf] %v728
        %761 = vst [vmem:[%s192 + $0x10] sm:$0xf] %v729
        %762 = vst [vmem:[%s192 + $0x14] sm:$0xf] %v730
        %763 = vst [vmem:[%s192 + $0x18] sm:$0xf] %v731
        %764 = vst [vmem:[%s192 + $0x1c] sm:$0xf] %v732
        %765 = vst [vmem:[%s192 + $0x20] sm:$0xf] %v733
        %766 = vst [vmem:[%s192 + $0x24] sm:$0xf] %v734
        %767 = vst [vmem:[%s192 + $0x28] sm:$0xf] %v735
        %768 = vst [vmem:[%s192 + $0x2c] sm:$0xf] %v736
        %769 = vst [vmem:[%s192 + $0x30] sm:$0xf] %v737
        %770 = vst [vmem:[%s192 + $0x34] sm:$0xf] %v738
        %771 = vst [vmem:[%s192 + $0x38] sm:$0xf] %v739
        %772 = vst [vmem:[%s192 + $0x3c] sm:$0xf] %v740
        %773 = vst [vmem:[%s192 + $0x40] sm:$0xf] %v741
        %774 = vst [vmem:[%s192 + $0x44] sm:$0xf] %v742
        %775 = vst [vmem:[%s192 + $0x48] sm:$0xf] %v743
        %776 = vst [vmem:[%s192 + $0x4c] sm:$0xf] %v744
        %777 = vst [vmem:[%s192 + $0x50] sm:$0xf] %v745
        %778 = vst [vmem:[%s192 + $0x54] sm:$0xf] %v746
        %779 = vst [vmem:[%s192 + $0x58] sm:$0xf] %v747
        %780 = vst [vmem:[%s192 + $0x5c] sm:$0xf] %v748
        %781 = vst [vmem:[%s192 + $0x60] sm:$0xf] %v749
        %782 = vst [vmem:[%s192 + $0x64] sm:$0xf] %v750
        %783 = vst [vmem:[%s192 + $0x68] sm:$0xf] %v751
        %784 = vst [vmem:[%s192 + $0x6c] sm:$0xf] %v752
        %785 = vst [vmem:[%s192 + $0x70] sm:$0xf] %v753
        %786 = vst [vmem:[%s192 + $0x74] sm:$0xf] %v754
        %787 = vst [vmem:[%s192 + $0x78] sm:$0xf] %v755
        %788 = vst [vmem:[%s192 + $0x7c] sm:$0xf] %v756
        %s789 = sand.u32 %s95, 1
        %s790 = scalar_lea.sflag [#allocation3], %s789
        %s791 = sand.u32 %s95, 1
        %s792 = smul.addr %s791, 128
        %s793 = scalar_lea.vmem [#allocation2], %s792
        %s794 = smul.u32 32, %s19
        %p795 = scmp.lt.s32.totalorder %s794, 63
        %s796 = scalar_select %p795, %s794, 63
        %s797 = smul.addr %s796, 8
        %s798 = scalar_lea.vmem %s4, %s797
        // Predicated region
        $region33: #{tpu_custom_call.1} parent=31 // pred_check
          %p799 = pneg %p105
        $region34: #{tpu_custom_call.1} parent=31 // pred_check_branch
          %801 = sbr.rel (%p799) target = $region36
        $region35: #{tpu_custom_call.1} parent=31 // pred_region
          %s802 = smul.u32 32, %s19
          %804 = vsyncadd %s790, 0
          %s805 = smul.addr %s802, 4
          %s806 = scalar_lea.hbm %s3, %s805
          %s807 = sshll.u32 %s793, 4
          %s808 = int_to_ptr.vmem [resolvable:$true] %s807
          %s809 = sshll.u32 %s806, 4
          %s810 = int_to_ptr.hbm [resolvable:$true] %s809
          %815 = dma.vmem_to_hbm [thread:$0]  %s808, 2048, %s810, %s790, 64, 64, 4
        $region36: #{tpu_custom_call.1} parent=31 // pred_fallthru
          _
        // Predicated region
        $region37: #{tpu_custom_call.1} parent=31 // pred_check
          %p816 = pneg %p131
        $region38: #{tpu_custom_call.1} parent=31 // pred_check_branch
          %818 = sbr.rel (%p816) target = $region40
        $region39: #{tpu_custom_call.1} parent=31 // pred_region
          %s819 = smul.u32 32, %s19
        $region40: #{tpu_custom_call.1} parent=31 // pred_fallthru
          _
      $region32: #{tpu_custom_call.1} parent=5 // pred_fallthru
        _
      %p820 = scmp.le.s32.totalorder 2, %s14
      // Predicated region
      $region41: #{tpu_custom_call.1} parent=5 // pred_check
        %p821 = pneg %p820
      $region42: #{tpu_custom_call.1} parent=5 // pred_check_branch
        %823 = sbr.rel (%p821) target = $region44
      $region43: #{tpu_custom_call.1} parent=5 // pred_region
        %s824 = ssub.s32 %s14, 2
        // Predicated region
        $region45: #{tpu_custom_call.1} parent=43 // pred_check
          %p825 = pneg %p111
        $region46: #{tpu_custom_call.1} parent=43 // pred_check_branch
          %827 = sbr.rel (%p825) target = $region48
        $region47: #{tpu_custom_call.1} parent=43 // pred_region
          %s828 = sand.u32 %s96, 1
          %s829 = scalar_lea.sflag [#allocation3], %s828
          %s830 = sand.u32 %s96, 1
          %s831 = smul.addr %s830, 128
          %s832 = scalar_lea.vmem [#allocation2], %s831
          %834 = dma.done %s829, 2048
        $region48: #{tpu_custom_call.1} parent=43 // pred_fallthru
          _
        // Predicated region
        $region49: #{tpu_custom_call.1} parent=43 // pred_check
          %p835 = pneg %p137
        $region50: #{tpu_custom_call.1} parent=43 // pred_check_branch
          %837 = sbr.rel (%p835) target = $region52
        $region51: #{tpu_custom_call.1} parent=43 // pred_region
          %s838 = smul.u32 32, %s20
          %p839 = scmp.lt.s32.totalorder %s838, 63
          %s840 = scalar_select %p839, %s838, 63
          %s841 = smul.addr %s840, 8
          %s842 = scalar_lea.vmem %s4, %s841
        $region52: #{tpu_custom_call.1} parent=43 // pred_fallthru
          _
      $region44: #{tpu_custom_call.1} parent=5 // pred_fallthru
        _
    $region6: #{tpu_custom_call.1} parent=1 // loop_footer
      %s18 = sadd.s32 1, %s14
    $region7: #{tpu_custom_call.1} parent=1 // loop_footer_branch
      %13 = sbr.rel target = $region3
    $region8: #{tpu_custom_call.1} parent=1 // loop_exit
      _
    %843 = vsyncpa [#allocation3], 1
    %s844 = scalar_lea.sflag [#allocation3], 1
    %845 = vsyncpa %s844, 1

</llo_original>
